<compile_context>
chip_gen: v5e
topology: v5e:2x2
jax: 0.10.0
libtpu: 0.0.40
codegen_flags: <defaults>
</compile_context>

<pallas_src>
import functools

import jax
import jax.numpy as jnp
from jax.experimental import pallas as pl
from jax.experimental.pallas import tpu as pltpu

_LANE = 128
_SUBLANE = 8
_MAX_BLOCK_ROWS = 2048  # (2048, 128) f32 = 1 MiB per input block


def _round_up(x, m):
    return ((x + m - 1) // m) * m


def _pdice_partial_kernel(p_ref, t_ref, acc_ref, *, rows_total, block_rows):
    """Accumulate [sum(t), sum(p), sum(p*t)] into a (3, 8, 128) VMEM accumulator."""
    i = pl.program_id(0)

    @pl.when(i == 0)
    def _():
        acc_ref[...] = jnp.zeros_like(acc_ref)

    p = p_ref[...].astype(jnp.float32)
    t = t_ref[...].astype(jnp.float32)

    def fold(x):
        # (block_rows, 128) -> (8, 128) with pure VPU adds.  The reshape groups
        # whole (8, 128) vreg tiles, so it is layout-preserving.
        return jnp.sum(x.reshape(block_rows // _SUBLANE, _SUBLANE, _LANE), axis=0)

    def accumulate(pp, tt):
        acc_ref[0] += fold(tt)        # i  = sum(y_true)
        acc_ref[1] += fold(pp)        # j  = sum(y_pred)
        acc_ref[2] += fold(pp * tt)   # intersection

    if rows_total % block_rows == 0:
        # Every block is full: no masking anywhere (branch chosen at trace time).
        accumulate(p, t)
    else:
        last = pl.num_programs(0) - 1

        # Full blocks: unmasked fast path.
        @pl.when(i < last)
        def _():
            accumulate(p, t)

        # Ragged last block: mask rows past the end of the array.
        @pl.when(i == last)
        def _():
            rows_left = rows_total - i * block_rows
            row_idx = jax.lax.broadcasted_iota(jnp.int32, (block_rows, _LANE), 0)
            valid = row_idx < rows_left
            accumulate(jnp.where(valid, p, 0.0), jnp.where(valid, t, 0.0))


def pdice_loss(y_pred, y_true):
    """Soft dice loss (batch=True path of the PyTorch module). Returns scalar f32."""
    assert y_pred.shape == y_true.shape
    p_flat = y_pred.reshape(-1)
    t_flat = y_true.reshape(-1)
    n = p_flat.shape[0]

    rows = n // _LANE
    lane_tail = n - rows * _LANE

    sum_t = jnp.float32(0.0)
    sum_p = jnp.float32(0.0)
    sum_pt = jnp.float32(0.0)

    if rows > 0:
        n_main = rows * _LANE
        p_main = p_flat if lane_tail == 0 else p_flat[:n_main]
        t_main = t_flat if lane_tail == 0 else t_flat[:n_main]
        p2 = p_main.reshape(rows, _LANE)
        t2 = t_main.reshape(rows, _LANE)

        block_rows = min(_MAX_BLOCK_ROWS, _round_up(rows, _SUBLANE))
        grid = (pl.cdiv(rows, block_rows),)
        blk = pl.BlockSpec((block_rows, _LANE), lambda i: (i, 0))

        partial = pl.pallas_call(
            functools.partial(
                _pdice_partial_kernel, rows_total=rows, block_rows=block_rows),
            out_shape=jax.ShapeDtypeStruct((3, _SUBLANE, _LANE), jnp.float32),
            grid_spec=pltpu.PrefetchScalarGridSpec(
                num_scalar_prefetch=0,
                grid=grid,
                in_specs=[blk, blk],
                # Constant block index across the grid -> VMEM-resident accumulator.
                out_specs=pl.BlockSpec((3, _SUBLANE, _LANE), lambda i: (0, 0, 0)),
            ),
            compiler_params=pltpu.CompilerParams(
                dimension_semantics=("arbitrary",)),
        )(p2, t2)

        sums = jnp.sum(partial, axis=(1, 2))  # (3,) tiny final reduce
        sum_t = sums[0]
        sum_p = sums[1]
        sum_pt = sums[2]

    if lane_tail:
        pt = p_flat[rows * _LANE:].astype(jnp.float32)
        tt = t_flat[rows * _LANE:].astype(jnp.float32)
        sum_t = sum_t + jnp.sum(tt)
        sum_p = sum_p + jnp.sum(pt)
        sum_pt = sum_pt + jnp.sum(pt * tt)

    smooth = jnp.float32(0.0)
    score = (2.0 * sum_pt + smooth) / (sum_t + sum_p + smooth)
    return jnp.float32(1.0) - score


def _reference(y_pred, y_true):
    t = y_true.astype(jnp.float32)
    p = y_pred.astype(jnp.float32)
    i = jnp.sum(t)
    j = jnp.sum(p)
    inter = jnp.sum(t * p)
    score = (2.0 * inter) / (i + j)
    return 1.0 - score


if __name__ == "__main__":
    key = jax.random.PRNGKey(0)
    kp, kt = jax.random.split(key)
    B, C, W, H = 2, 4, 16, 16
    # predictions in (0,1) like a sigmoid output, targets in {0,1}
    y_pred = jax.nn.sigmoid(jax.random.normal(kp, (B, C, W, H), jnp.float32))
    y_true = (jax.random.uniform(kt, (B, C, W, H)) > 0.5).astype(jnp.float32)

    out = pdice_loss(y_pred, y_true)
    out = jax.block_until_ready(out)

    ref = _reference(y_pred, y_true)
    assert jnp.allclose(out, ref, rtol=1e-5, atol=1e-5), (out, ref)
    print("KERNEL_OK")
</pallas_src>

<mosaic_0001>
module attributes {stable_mosaic.version = 11 : i64} {
  func.func @_pdice_partial_kernel(%arg0: i32, %arg1: memref<16x128xf32, #tpu.memory_space<vmem>>, %arg2: memref<16x128xf32, #tpu.memory_space<vmem>>, %arg3: memref<3x8x128xf32, #tpu.memory_space<vmem>>) attributes {dimension_semantics = [#tpu.dimension_semantics<arbitrary>], iteration_bounds = array<i64: 1>, scalar_prefetch = 0 : i64, scratch_operands = 0 : i64, tpu.core_type = #tpu.core_type<tc>, window_params = [{transform_indices = @transform_0, window_bounds = array<i64: 16, 128>}, {transform_indices = @transform_1, window_bounds = array<i64: 16, 128>}, {pipeline_mode = #tpu.pipeline_mode<synchronous>, transform_indices = @transform_2, window_bounds = array<i64: 3, 8, 128>}]} {
    %c0_i32 = arith.constant 0 : i32
    %0 = arith.cmpi eq, %arg0, %c0_i32 : i32
    %1 = arith.extui %0 : i1 to i32
    %c0_i32_0 = arith.constant 0 : i32
    %2 = arith.cmpi ne, %1, %c0_i32_0 : i32
    scf.if %2 {
      %cst_22 = arith.constant 0.000000e+00 : f32
      %30 = vector.broadcast %cst_22 : f32 to vector<3x8x128xf32>
      %c0_23 = arith.constant 0 : index
      %c0_24 = arith.constant 0 : index
      %c0_25 = arith.constant 0 : index
      %31 = vector.load %arg3[%c0_23, %c0_24, %c0_25] : memref<3x8x128xf32, #tpu.memory_space<vmem>>, vector<3x8x128xf32>
      tpu.vector_store %arg3[%c0_23, %c0_24, %c0_25], %30 {strides = array<i32>} : memref<3x8x128xf32, #tpu.memory_space<vmem>>, vector<3x8x128xf32>,
    } else {
    }
    %c0 = arith.constant 0 : index
    %c0_1 = arith.constant 0 : index
    %3 = vector.load %arg1[%c0, %c0_1] : memref<16x128xf32, #tpu.memory_space<vmem>>, vector<16x128xf32>
    %c0_2 = arith.constant 0 : index
    %c0_3 = arith.constant 0 : index
    %4 = vector.load %arg2[%c0_2, %c0_3] : memref<16x128xf32, #tpu.memory_space<vmem>>, vector<16x128xf32>
    %c0_4 = arith.constant 0 : index
    %c0_5 = arith.constant 0 : index
    %c0_6 = arith.constant 0 : index
    %5 = vector.load %arg3[%c0_4, %c0_5, %c0_6] : memref<3x8x128xf32, #tpu.memory_space<vmem>>, vector<1x8x128xf32>
    %6 = vector.shape_cast %5 : vector<1x8x128xf32> to vector<8x128xf32>
    %7 = vector.shape_cast %4 : vector<16x128xf32> to vector<2x8x128xf32>
    %cst = arith.constant dense<0.000000e+00> : vector<8x128xf32>
    %8 = vector.multi_reduction <add>, %7, %cst [0] : vector<2x8x128xf32> to vector<8x128xf32>
    %9 = arith.addf %6, %8 : vector<8x128xf32>
    %c0_7 = arith.constant 0 : index
    %c0_8 = arith.constant 0 : index
    %c0_9 = arith.constant 0 : index
    %10 = vector.load %arg3[%c0_7, %c0_8, %c0_9] : memref<3x8x128xf32, #tpu.memory_space<vmem>>, vector<1x8x128xf32>
    %11 = vector.shape_cast %10 : vector<1x8x128xf32> to vector<8x128xf32>
    %12 = vector.shape_cast %9 : vector<8x128xf32> to vector<1x8x128xf32>
    tpu.vector_store %arg3[%c0_7, %c0_8, %c0_9], %12 {strides = array<i32>} : memref<3x8x128xf32, #tpu.memory_space<vmem>>, vector<1x8x128xf32>,
    %c1 = arith.constant 1 : index
    %c0_10 = arith.constant 0 : index
    %c0_11 = arith.constant 0 : index
    %13 = vector.load %arg3[%c1, %c0_10, %c0_11] : memref<3x8x128xf32, #tpu.memory_space<vmem>>, vector<1x8x128xf32>
    %14 = vector.shape_cast %13 : vector<1x8x128xf32> to vector<8x128xf32>
    %15 = vector.shape_cast %3 : vector<16x128xf32> to vector<2x8x128xf32>
    %cst_12 = arith.constant dense<0.000000e+00> : vector<8x128xf32>
    %16 = vector.multi_reduction <add>, %15, %cst_12 [0] : vector<2x8x128xf32> to vector<8x128xf32>
    %17 = arith.addf %14, %16 : vector<8x128xf32>
    %c1_13 = arith.constant 1 : index
    %c0_14 = arith.constant 0 : index
    %c0_15 = arith.constant 0 : index
    %18 = vector.load %arg3[%c1_13, %c0_14, %c0_15] : memref<3x8x128xf32, #tpu.memory_space<vmem>>, vector<1x8x128xf32>
    %19 = vector.shape_cast %18 : vector<1x8x128xf32> to vector<8x128xf32>
    %20 = vector.shape_cast %17 : vector<8x128xf32> to vector<1x8x128xf32>
    tpu.vector_store %arg3[%c1_13, %c0_14, %c0_15], %20 {strides = array<i32>} : memref<3x8x128xf32, #tpu.memory_space<vmem>>, vector<1x8x128xf32>,
    %c2 = arith.constant 2 : index
    %c0_16 = arith.constant 0 : index
    %c0_17 = arith.constant 0 : index
    %21 = vector.load %arg3[%c2, %c0_16, %c0_17] : memref<3x8x128xf32, #tpu.memory_space<vmem>>, vector<1x8x128xf32>
    %22 = vector.shape_cast %21 : vector<1x8x128xf32> to vector<8x128xf32>
    %23 = arith.mulf %3, %4 : vector<16x128xf32>
    %24 = vector.shape_cast %23 : vector<16x128xf32> to vector<2x8x128xf32>
    %cst_18 = arith.constant dense<0.000000e+00> : vector<8x128xf32>
    %25 = vector.multi_reduction <add>, %24, %cst_18 [0] : vector<2x8x128xf32> to vector<8x128xf32>
    %26 = arith.addf %22, %25 : vector<8x128xf32>
    %c2_19 = arith.constant 2 : index
    %c0_20 = arith.constant 0 : index
    %c0_21 = arith.constant 0 : index
    %27 = vector.load %arg3[%c2_19, %c0_20, %c0_21] : memref<3x8x128xf32, #tpu.memory_space<vmem>>, vector<1x8x128xf32>
    %28 = vector.shape_cast %27 : vector<1x8x128xf32> to vector<8x128xf32>
    %29 = vector.shape_cast %26 : vector<8x128xf32> to vector<1x8x128xf32>
    tpu.vector_store %arg3[%c2_19, %c0_20, %c0_21], %29 {strides = array<i32>} : memref<3x8x128xf32, #tpu.memory_space<vmem>>, vector<1x8x128xf32>,
    return
  }
  func.func @transform_0(%arg0: i32) -> (i32, i32) {
    %c0_i32 = arith.constant 0 : i32
    %c0_i32_0 = arith.constant 0 : i32
    return %arg0, %c0_i32 : i32, i32
  }
  func.func @transform_1(%arg0: i32) -> (i32, i32) {
    %c0_i32 = arith.constant 0 : i32
    %c0_i32_0 = arith.constant 0 : i32
    return %arg0, %c0_i32 : i32, i32
  }
  func.func @transform_2(%arg0: i32) -> (i32, i32, i32) {
    %c0_i32 = arith.constant 0 : i32
    %c0_i32_0 = arith.constant 0 : i32
    %c0_i32_1 = arith.constant 0 : i32
    %c0_i32_2 = arith.constant 0 : i32
    return %c0_i32, %c0_i32_0, %c0_i32_1 : i32, i32, i32
  }
}

</mosaic_0001>

<llo_original>
// kernel: tpu_custom_call.1
$region0: #{tpu_custom_call.1}
  #allocation0 [shape = 'u32[]', space=smem, size = 0x4, offset = 0x4, fixed_abs, tag = 'smem constant byte address 0x4 - core index']
  #allocation1 [shape = 'u32[72,128]{1,0:T(1,128)}', space=vmem, size = 0x9000, scoped, tag = 'internal scratch']
  %s0 = inlined_call_operand.hbm [shape: f32[16,128], index: 0, kind: input, shape index: {}]
  %s1 = inlined_call_operand.hbm [shape: f32[16,128], index: 1, kind: input, shape index: {}]
  %s2 = inlined_call_operand.hbm [shape: f32[3,8,128], index: 2, kind: output, shape index: {}]
  %s3 = sld [smem:[#allocation0]]
  $region30: #{tpu_custom_call.1} parent=0
    _
  %s5 = ssub.s32 1, %s3
  %s6 = scalar_select 0, %s5, %s3
  $region1: #{tpu_custom_call.1} parent=0
    #allocation2 [shape = 'u8[8192]{0}', space=vmem, size = 0x2000, scoped, tag = 'input window, operand 0, single buffered']
    #allocation3 [shape = 's32[1]{0}', space=sflag, size = 0x4, scoped, tag = 'scoped memory for tpu_custom_call.1']
    #allocation4 [shape = 's32[1]{0}', space=sflag, size = 0x4, scoped, tag = 'scoped memory for tpu_custom_call.1']
    #allocation5 [shape = 'u8[8192]{0}', space=vmem, size = 0x2000, scoped, tag = 'input window, operand 1, single buffered']
    #allocation6 [shape = 's32[1]{0}', space=sflag, size = 0x4, scoped, tag = 'scoped memory for tpu_custom_call.1']
    #allocation7 [shape = 'u8[12288]{0}', space=vmem, size = 0x3000, scoped, tag = 'output window, operand 0, single buffered']
    %7 = vsyncpa [#allocation3], 0
    %8 = vsyncpa [#allocation6], 0
    %9 = vsyncpa [#allocation4], 0
    // Predicated region
    $region2: #{tpu_custom_call.1} parent=1 // pred_check
      _
    $region3: #{tpu_custom_call.1} parent=1 // pred_check_branch
      %11 = sbr.rel (0) target = $region5
    $region4: #{tpu_custom_call.1} parent=1 // pred_region
      %13 = vsyncadd [#allocation3], 0
      %s14 = sshll.u32 %s0, 4
      %s15 = int_to_ptr.hbm [resolvable:$true] %s14
      %s16 = sshll.u32 [#allocation2], 4
      %s17 = int_to_ptr.vmem [resolvable:$true] %s16
      %22 = dma.hbm_to_vmem [thread:$0]  %s15, 256, %s17, [#allocation3], 128, 128, 8
    $region5: #{tpu_custom_call.1} parent=1 // pred_fallthru
      _
    // Predicated region
    $region6: #{tpu_custom_call.1} parent=1 // pred_check
      _
    $region7: #{tpu_custom_call.1} parent=1 // pred_check_branch
      %24 = sbr.rel (0) target = $region9
    $region8: #{tpu_custom_call.1} parent=1 // pred_region
      %26 = vsyncadd [#allocation6], 0
      %s27 = sshll.u32 %s1, 4
      %s28 = int_to_ptr.hbm [resolvable:$true] %s27
      %s29 = sshll.u32 [#allocation5], 4
      %s30 = int_to_ptr.vmem [resolvable:$true] %s29
      %35 = dma.hbm_to_vmem [thread:$0]  %s28, 256, %s30, [#allocation6], 128, 128, 8
    $region9: #{tpu_custom_call.1} parent=1 // pred_fallthru
      _
    // Predicated region
    $region10: #{tpu_custom_call.1} parent=1 // pred_check
      _
    $region11: #{tpu_custom_call.1} parent=1 // pred_check_branch
      %37 = sbr.rel (0) target = $region13
    $region12: #{tpu_custom_call.1} parent=1 // pred_region
      %39 = dma.done [#allocation3], 256
    $region13: #{tpu_custom_call.1} parent=1 // pred_fallthru
      _
    // Predicated region
    $region14: #{tpu_custom_call.1} parent=1 // pred_check
      _
    $region15: #{tpu_custom_call.1} parent=1 // pred_check_branch
      %41 = sbr.rel (0) target = $region17
    $region16: #{tpu_custom_call.1} parent=1 // pred_region
      %43 = dma.done [#allocation6], 256
    $region17: #{tpu_custom_call.1} parent=1 // pred_fallthru
      _
    %p44 = scmp.eq.s32.totalorder 0, 0
    // Predicated region
    $region18: #{tpu_custom_call.1} parent=1 // pred_check
      %p45 = pneg %p44
    $region19: #{tpu_custom_call.1} parent=1 // pred_check_branch
      %47 = sbr.rel (%p45) target = $region21
    $region20: #{tpu_custom_call.1} parent=1 // pred_region
      %48 = vst [vmem:[#allocation7] sm:$0xff] 0.0
      %49 = vst [vmem:[#allocation7 + $0x8] sm:$0xff] 0.0
      %50 = vst [vmem:[#allocation7 + $0x10] sm:$0xff] 0.0
    $region21: #{tpu_custom_call.1} parent=1 // pred_fallthru
      _
    %v51 = vld [vmem:[#allocation2] sm:$0xff]
    %v52 = vld [vmem:[#allocation2 + $0x8] sm:$0xff]
    %v53 = vld [vmem:[#allocation5] sm:$0xff]
    %v54 = vld [vmem:[#allocation5 + $0x8] sm:$0xff]
    %v55 = vld [vmem:[#allocation7] sm:$0xff]
    %v56 = vadd.f32 %v53, %v54
    %v57 = vadd.f32 %v55, %v56
    %58 = vst [vmem:[#allocation7] sm:$0xff] %v57
    %s59 = scalar_lea.vmem [#allocation7], 8
    %v60 = vld [vmem:[%s59] sm:$0xff]
    %v61 = vadd.f32 %v51, %v52
    %v62 = vadd.f32 %v60, %v61
    %63 = vst [vmem:[%s59] sm:$0xff] %v62
    %s64 = scalar_lea.vmem [#allocation7], 16
    %v65 = vld [vmem:[%s64] sm:$0xff]
    %v66 = vmul.f32 %v51, %v53
    %v67 = vmul.f32 %v52, %v54
    %v68 = vadd.f32 %v66, %v67
    %v69 = vadd.f32 %v65, %v68
    %70 = vst [vmem:[%s64] sm:$0xff] %v69
    // Predicated region
    $region22: #{tpu_custom_call.1} parent=1 // pred_check
      _
    $region23: #{tpu_custom_call.1} parent=1 // pred_check_branch
      %72 = sbr.rel (0) target = $region25
    $region24: #{tpu_custom_call.1} parent=1 // pred_region
      %74 = vsyncadd [#allocation4], 0
      %s75 = sshll.u32 [#allocation7], 4
      %s76 = int_to_ptr.vmem [resolvable:$true] %s75
      %s77 = sshll.u32 %s2, 4
      %s78 = int_to_ptr.hbm [resolvable:$true] %s77
      %83 = dma.vmem_to_hbm [thread:$0]  %s76, 384, %s78, [#allocation4], 128, 128, 8
    $region25: #{tpu_custom_call.1} parent=1 // pred_fallthru
      _
    // Predicated region
    $region26: #{tpu_custom_call.1} parent=1 // pred_check
      _
    $region27: #{tpu_custom_call.1} parent=1 // pred_check_branch
      %85 = sbr.rel (0) target = $region29
    $region28: #{tpu_custom_call.1} parent=1 // pred_region
      %87 = dma.done [#allocation4], 384
    $region29: #{tpu_custom_call.1} parent=1 // pred_fallthru
      _
    %88 = vsyncpa [#allocation3], 1
    %89 = vsyncpa [#allocation6], 1
    %90 = vsyncpa [#allocation4], 1

</llo_original>
